<compile_context>
chip_gen: v5e
topology: v5e:2x2
jax: 0.10.0
libtpu: 0.0.40
codegen_flags: <defaults>
</compile_context>

<pallas_src>
import functools

import jax
import jax.numpy as jnp
from jax.experimental import pallas as pl
from jax.experimental.pallas import tpu as pltpu

_LANES = 128
_SUB = 8  # f32 sublanes per vreg


def _vmem_capacity_bytes():
    try:
        v = getattr(pltpu.get_tpu_info(), "vmem_capacity_bytes", None)
        if v:
            return int(v)
    except Exception:
        pass
    try:
        if "v7" in jax.devices()[0].device_kind.lower():
            return 64 << 20
        return 128 << 20
    except Exception:
        return 64 << 20  # conservative (v7x per-TC)


def _num_tensorcores():
    """TensorCores a 'parallel' Pallas grid axis can be sharded across."""
    try:
        info = pltpu.get_tpu_info()
        for attr in ("num_cores", "core_count", "num_tensorcores"):
            v = getattr(info, attr, None)
            if isinstance(v, int) and 1 <= v <= 8:
                return int(v)
    except Exception:
        pass
    try:
        kind = jax.devices()[0].device_kind.lower()
        if ("v7" in kind) or ("v4" in kind) or ("v5p" in kind):
            return 2
    except Exception:
        pass
    return 1  # v5e / v6e


def _input_spec(block_shape, index_map, n_buf):
    if n_buf > 2:
        try:
            return pl.BlockSpec(block_shape, index_map,
                                pipeline_mode=pl.Buffered(n_buf))
        except Exception:  # older jax without BlockSpec(pipeline_mode=...)
            pass
    return pl.BlockSpec(block_shape, index_map)


def _ortho_dot_kernel(x1_ref, x2_ref, out_ref, *, rows_valid, rows_tile,
                      any_partial):
    """Accumulate per-batch-row dot partials into the resident output block.

    x1_ref/x2_ref : (B, rows_tile, 128) input blocks (any float dtype).
    out_ref       : (1, B, 8, 128) f32 lane-dense partial sums; same block
                    index across the k axis -> acts as the accumulator.
    """
    p = pl.program_id(0)
    k = pl.program_id(1)

    @pl.when(k == 0)
    def _():
        out_ref[...] = jnp.zeros_like(out_ref)

    prod = x1_ref[...].astype(jnp.float32) * x2_ref[...].astype(jnp.float32)
    bsz, rt, lanes = prod.shape

    def fold(v):
        # Fold whole (8, 128) vregs: pure VALU adds; the sublane/lane collapse
        # is deferred to the wrapper.
        return v.reshape(bsz, rt // _SUB, _SUB, lanes).sum(axis=1)[None]

    if not any_partial:
        out_ref[...] += fold(prod)
    else:
        tile_idx = p * pl.num_programs(1) + k
        row_start = tile_idx * rows_tile
        is_partial = row_start + rows_tile > rows_valid

        @pl.when(jnp.logical_not(is_partial))
        def _():  # fast path: no iota / compare / select
            out_ref[...] += fold(prod)

        @pl.when(is_partial)
        def _():  # trailing / overhang tile: mask out-of-range rows
            row_ids = row_start + jax.lax.broadcasted_iota(
                jnp.int32, (1, rt, 1), 1)
            out_ref[...] += fold(jnp.where(row_ids < rows_valid, prod, 0.0))


def ortho_loss(input1, input2, *, target_block_bytes=8 << 20,
               force_partitions=None):
    """Pallas implementation of OrthoLoss.forward. Returns a scalar f32."""
    b = input1.shape[0]
    x1 = input1.reshape(b, -1)
    x2 = input2.reshape(b, -1)
    d = x1.shape[1]
    if b == 0 or d == 0:
        return jnp.zeros((), jnp.float32)

    inv_scale = 1.0 / (float(d) * float(b))

    r = d // _LANES                    # full 128-lane rows per batch element
    d_main = r * _LANES
    d_rem = d - d_main

    itemsize = jnp.dtype(x1.dtype).itemsize
    row_mult = 8 if itemsize >= 4 else (16 if itemsize == 2 else 32)
    bytes_per_row = b * _LANES * itemsize

    # --- generation-aware block sizing --------------------------------------
    vmem_cap = _vmem_capacity_bytes()
    vmem_budget = min(int(vmem_cap * 0.55), 36 << 20)      # working-set budget
    max_block_bytes = (vmem_budget - (2 << 20)) // 4        # 2 inputs x 2 bufs
    block_cap = max(0, min(int(target_block_bytes), max_block_bytes))
    rows_budget = block_cap // bytes_per_row

    rows_tile = (min(rows_budget, r) // row_mult) * row_mult
    if rows_tile == 0:
        # Covers: D < 128 (r == 0), a tiny lane-aligned part (r < row_mult),
        # and B so large even the minimum tile overflows the VMEM budget.
        # TODO(synk): add a batch grid axis instead of a pure-JAX fallback for huge B.
        dots = jnp.sum(x1.astype(jnp.float32) * x2.astype(jnp.float32), axis=1)
        return jnp.sum(dots * dots) * inv_scale

    # Remainder lanes (conv features are usually a multiple of 128).
    rem_dots = None
    if d_rem:
        rem_dots = jnp.sum(
            x1[:, d_main:].astype(jnp.float32) * x2[:, d_main:].astype(jnp.float32),
            axis=1)

    x1m = (x1[:, :d_main] if d_rem else x1).reshape(b, r, _LANES)
    x2m = (x2[:, :d_main] if d_rem else x2).reshape(b, r, _LANES)

    tiles_total = -(-r // rows_tile)

    # --- TensorCore split (unconditional on multi-core chips) ---------------
    n_par = int(force_partitions) if force_partitions is not None else _num_tensorcores()
    n_par = max(1, min(n_par, tiles_total))
    k_tiles = -(-tiles_total // n_par)
    overhang = n_par * k_tiles > tiles_total
    any_partial = (n_par * k_tiles * rows_tile) > r

    # --- buffering depth / VMEM limit ----------------------------------------
    block_bytes = b * rows_tile * _LANES * itemsize
    out_block_bytes = b * _SUB * _LANES * 4
    n_buf = 2
    if (block_bytes <= (5 << 20) and k_tiles >= 2
            and 6 * block_bytes + 2 * out_block_bytes + (1 << 20) <= vmem_budget):
        n_buf = 3
    working_set = 2 * n_buf * block_bytes + 2 * out_block_bytes
    vmem_limit = int(min(max(working_set + (4 << 20), 16 << 20), 48 << 20))

    if overhang:
        def in_idx(p, k):  # clamp overhang tiles; their rows are fully masked
            return (0, jnp.minimum(p * k_tiles + k, tiles_total - 1), 0)
    else:
        def in_idx(p, k):
            return (0, p * k_tiles + k, 0)

    kernel = functools.partial(
        _ortho_dot_kernel, rows_valid=r, rows_tile=rows_tile,
        any_partial=any_partial)

    partials = pl.pallas_call(
        kernel,
        out_shape=jax.ShapeDtypeStruct((n_par, b, _SUB, _LANES), jnp.float32),
        grid_spec=pltpu.PrefetchScalarGridSpec(
            num_scalar_prefetch=0,
            grid=(n_par, k_tiles),
            in_specs=[
                _input_spec((b, rows_tile, _LANES), in_idx, n_buf),
                _input_spec((b, rows_tile, _LANES), in_idx, n_buf),
            ],
            out_specs=pl.BlockSpec((1, b, _SUB, _LANES),
                                   lambda p, k: (p, 0, 0, 0)),
        ),
        compiler_params=pltpu.CompilerParams(
            dimension_semantics=("parallel", "arbitrary"),
            vmem_limit_bytes=vmem_limit,
        ),
        cost_estimate=pl.CostEstimate(
            flops=2 * b * d_main,
            transcendentals=0,
            bytes_accessed=2 * b * d_main * itemsize + n_par * b * _SUB * _LANES * 4,
        ),
    )(x1m, x2m)

    dots = partials.reshape(n_par, b, -1).sum(axis=(0, 2))   # (B,)
    if rem_dots is not None:
        dots = dots + rem_dots
    return jnp.sum(dots * dots) * inv_scale


def ortho_loss_ref(input1, input2):
    """Pure-JAX reference matching the PyTorch code exactly."""
    b = input1.shape[0]
    x1 = input1.reshape(b, -1).astype(jnp.float32)
    x2 = input2.reshape(b, -1).astype(jnp.float32)
    d = x1.shape[1]
    dots = jnp.sum(x1 * x2, axis=1)
    return jnp.sum(dots ** 2 / d) / b


def _check(name, fn, x1, x2, rtol=1e-4, atol=1e-6):
    got = jax.block_until_ready(fn(x1, x2))
    want = jax.block_until_ready(ortho_loss_ref(x1, x2))
    assert jnp.allclose(got, want, rtol=rtol, atol=atol), (name, got, want)


if __name__ == "__main__":
    key = jax.random.PRNGKey(0)
    k1, k2, k3, k4, k5, k6, k7, k8, k9, k10 = jax.random.split(key, 10)

    # Main case: small NCHW conv features, as in the PyTorch module.
    a1 = jax.random.normal(k1, (2, 4, 16, 16), dtype=jnp.float32)
    a2 = jax.random.normal(k2, (2, 4, 16, 16), dtype=jnp.float32)
    _check("base", jax.jit(ortho_loss), a1, a2)

    # Feature dim not a multiple of 128: remainder-lane path + kernel.
    b1 = jax.random.normal(k3, (3, 5, 15, 15), dtype=jnp.float32)
    b2 = jax.random.normal(k4, (3, 5, 15, 15), dtype=jnp.float32)
    _check("remainder", jax.jit(ortho_loss), b1, b2)

    # Odd tile count + forced 2-TensorCore split (overhang clamp + row mask).
    c1 = jax.random.normal(k5, (2, 4, 40, 16), dtype=jnp.float32)
    c2 = jax.random.normal(k6, (2, 4, 40, 16), dtype=jnp.float32)
    _check("two_core_mask",
           jax.jit(lambda u, v: ortho_loss(u, v, target_block_bytes=8192,
                                           force_partitions=2)), c1, c2)

    # Multi-tile streaming path with 3-deep input buffering.
    d1 = jax.random.normal(k7, (2, 4, 64, 16), dtype=jnp.float32)
    d2 = jax.random.normal(k8, (2, 4, 64, 16), dtype=jnp.float32)
    _check("buffered",
           jax.jit(lambda u, v: ortho_loss(u, v, target_block_bytes=8192)),
           d1, d2)

    # Tiny feature dim (D < 128): pure-JAX fallback path.
    e1 = jax.random.normal(k9, (2, 3, 5, 7), dtype=jnp.float32)
    e2 = jax.random.normal(k10, (2, 3, 5, 7), dtype=jnp.float32)
    _check("tiny_d", jax.jit(ortho_loss), e1, e2)

    print("KERNEL_OK")
</pallas_src>

<mosaic_0001>
module attributes {stable_mosaic.version = 11 : i64} {
  func.func @_ortho_dot_kernel(%arg0: i32, %arg1: i32, %arg2: memref<2x8x128xf32, #tpu.memory_space<vmem>>, %arg3: memref<2x8x128xf32, #tpu.memory_space<vmem>>, %arg4: memref<1x2x8x128xf32, #tpu.memory_space<vmem>>) attributes {dimension_semantics = [#tpu.dimension_semantics<parallel>, #tpu.dimension_semantics<arbitrary>], iteration_bounds = array<i64: 1, 1>, scalar_prefetch = 0 : i64, scratch_operands = 0 : i64, tpu.core_type = #tpu.core_type<tc>, window_params = [{transform_indices = @transform_0, window_bounds = array<i64: 2, 8, 128>}, {transform_indices = @transform_1, window_bounds = array<i64: 2, 8, 128>}, {transform_indices = @transform_2, window_bounds = array<i64: 1, 2, 8, 128>}]} {
    %c0_i32 = arith.constant 0 : i32
    %0 = arith.cmpi eq, %arg1, %c0_i32 : i32
    %1 = arith.extui %0 : i1 to i32
    %c0_i32_0 = arith.constant 0 : i32
    %2 = arith.cmpi ne, %1, %c0_i32_0 : i32
    scf.if %2 {
      %cst_14 = arith.constant 0.000000e+00 : f32
      %12 = vector.broadcast %cst_14 : f32 to vector<1x2x8x128xf32>
      %c0_15 = arith.constant 0 : index
      %c0_16 = arith.constant 0 : index
      %c0_17 = arith.constant 0 : index
      %c0_18 = arith.constant 0 : index
      %13 = vector.load %arg4[%c0_15, %c0_16, %c0_17, %c0_18] : memref<1x2x8x128xf32, #tpu.memory_space<vmem>>, vector<1x2x8x128xf32>
      tpu.vector_store %arg4[%c0_15, %c0_16, %c0_17, %c0_18], %12 {strides = array<i32>} : memref<1x2x8x128xf32, #tpu.memory_space<vmem>>, vector<1x2x8x128xf32>,
    } else {
    }
    %c0 = arith.constant 0 : index
    %c0_1 = arith.constant 0 : index
    %c0_2 = arith.constant 0 : index
    %3 = vector.load %arg2[%c0, %c0_1, %c0_2] : memref<2x8x128xf32, #tpu.memory_space<vmem>>, vector<2x8x128xf32>
    %c0_3 = arith.constant 0 : index
    %c0_4 = arith.constant 0 : index
    %c0_5 = arith.constant 0 : index
    %4 = vector.load %arg3[%c0_3, %c0_4, %c0_5] : memref<2x8x128xf32, #tpu.memory_space<vmem>>, vector<2x8x128xf32>
    %5 = arith.mulf %3, %4 : vector<2x8x128xf32>
    %c0_6 = arith.constant 0 : index
    %c0_7 = arith.constant 0 : index
    %c0_8 = arith.constant 0 : index
    %c0_9 = arith.constant 0 : index
    %6 = vector.load %arg4[%c0_6, %c0_7, %c0_8, %c0_9] : memref<1x2x8x128xf32, #tpu.memory_space<vmem>>, vector<1x2x8x128xf32>
    %7 = vector.shape_cast %5 : vector<2x8x128xf32> to vector<2x1x8x128xf32>
    %cst = arith.constant dense<0.000000e+00> : vector<2x8x128xf32>
    %8 = vector.multi_reduction <add>, %7, %cst [1] : vector<2x1x8x128xf32> to vector<2x8x128xf32>
    %9 = vector.shape_cast %8 : vector<2x8x128xf32> to vector<1x2x8x128xf32>
    %10 = arith.addf %6, %9 : vector<1x2x8x128xf32>
    %c0_10 = arith.constant 0 : index
    %c0_11 = arith.constant 0 : index
    %c0_12 = arith.constant 0 : index
    %c0_13 = arith.constant 0 : index
    %11 = vector.load %arg4[%c0_10, %c0_11, %c0_12, %c0_13] : memref<1x2x8x128xf32, #tpu.memory_space<vmem>>, vector<1x2x8x128xf32>
    tpu.vector_store %arg4[%c0_10, %c0_11, %c0_12, %c0_13], %10 {strides = array<i32>} : memref<1x2x8x128xf32, #tpu.memory_space<vmem>>, vector<1x2x8x128xf32>,
    return
  }
  func.func @transform_0(%arg0: i32, %arg1: i32) -> (i32, i32, i32) {
    %c1_i32 = arith.constant 1 : i32
    %0 = arith.muli %arg0, %c1_i32 : i32
    %1 = arith.addi %0, %arg1 : i32
    %c0_i32 = arith.constant 0 : i32
    %c0_i32_0 = arith.constant 0 : i32
    %c0_i32_1 = arith.constant 0 : i32
    return %c0_i32, %1, %c0_i32_0 : i32, i32, i32
  }
  func.func @transform_1(%arg0: i32, %arg1: i32) -> (i32, i32, i32) {
    %c1_i32 = arith.constant 1 : i32
    %0 = arith.muli %arg0, %c1_i32 : i32
    %1 = arith.addi %0, %arg1 : i32
    %c0_i32 = arith.constant 0 : i32
    %c0_i32_0 = arith.constant 0 : i32
    %c0_i32_1 = arith.constant 0 : i32
    return %c0_i32, %1, %c0_i32_0 : i32, i32, i32
  }
  func.func @transform_2(%arg0: i32, %arg1: i32) -> (i32, i32, i32, i32) {
    %c0_i32 = arith.constant 0 : i32
    %c0_i32_0 = arith.constant 0 : i32
    %c0_i32_1 = arith.constant 0 : i32
    %c0_i32_2 = arith.constant 0 : i32
    return %arg0, %c0_i32, %c0_i32_0, %c0_i32_1 : i32, i32, i32, i32
  }
}

</mosaic_0001>

<llo_original>
// kernel: ortho_loss.1
$region0: #{ortho_loss.1}
  #allocation0 [shape = 'u32[]', space=smem, size = 0x4, offset = 0x4, fixed_abs, tag = 'smem constant byte address 0x4 - core index']
  #allocation1 [shape = 'u32[72,128]{1,0:T(1,128)}', space=vmem, size = 0x9000, scoped, tag = 'internal scratch']
  %s0 = inlined_call_operand.vmem [shape: f32[2,8,128], index: 0, kind: input, shape index: {}]
  %s1 = inlined_call_operand.vmem [shape: f32[2,8,128], index: 1, kind: input, shape index: {}]
  %s2 = inlined_call_operand.vmem [shape: f32[1,2,8,128], index: 2, kind: output, shape index: {}]
  %s3 = sld [smem:[#allocation0]]
  $region22: #{ortho_loss.1} parent=0
    _
  %s5 = ssub.s32 1, %s3
  %s6 = scalar_select 0, %s5, %s3
  // Predicated region
  $region2: #{ortho_loss.1} parent=0 // pred_check
    _
  $region3: #{ortho_loss.1} parent=0 // pred_check_branch
    %8 = sbr.rel (0) target = $region5
  $region4: #{ortho_loss.1} parent=0 // pred_region
    %s9 = sadd.s32 0, 0
    %p10 = scmp.lt.s32.totalorder %s9, 0
    %s11 = scalar_select %p10, %s9, 0
    %s12 = smul.addr %s11, 8
    %s13 = scalar_lea.vmem %s0, %s12
    %s14 = sadd.s32 0, 0
  $region5: #{ortho_loss.1} parent=0 // pred_fallthru
    _
  // Predicated region
  $region6: #{ortho_loss.1} parent=0 // pred_check
    _
  $region7: #{ortho_loss.1} parent=0 // pred_check_branch
    %16 = sbr.rel (0) target = $region9
  $region8: #{ortho_loss.1} parent=0 // pred_region
    %s17 = sadd.s32 0, 0
    %p18 = scmp.lt.s32.totalorder %s17, 0
    %s19 = scalar_select %p18, %s17, 0
    %s20 = smul.addr %s19, 8
    %s21 = scalar_lea.vmem %s1, %s20
    %s22 = sadd.s32 0, 0
  $region9: #{ortho_loss.1} parent=0 // pred_fallthru
    _
  %s23 = sadd.s32 0, 0
  %p24 = scmp.lt.s32.totalorder %s23, 0
  %s25 = scalar_select %p24, %s23, 0
  %s26 = smul.addr %s25, 8
  %s27 = scalar_lea.vmem %s0, %s26
  %s28 = sadd.s32 0, 0
  %p29 = scmp.lt.s32.totalorder %s28, 0
  %s30 = scalar_select %p29, %s28, 0
  %s31 = smul.addr %s30, 8
  %s32 = scalar_lea.vmem %s1, %s31
  %s33 = sadd.s32 0, 0
  %p34 = scmp.lt.s32.totalorder %s33, 0
  %s35 = scalar_select %p34, %s33, 0
  %s36 = smul.addr %s35, 8
  %s37 = scalar_lea.vmem %s0, %s36
  %s38 = sadd.s32 0, 0
  %s39 = sadd.s32 0, 0
  %p40 = scmp.lt.s32.totalorder %s39, 0
  %s41 = scalar_select %p40, %s39, 0
  %s42 = smul.addr %s41, 8
  %s43 = scalar_lea.vmem %s1, %s42
  %s44 = sadd.s32 0, 0
  %p45 = scmp.eq.s32.totalorder 0, 0
  // Predicated region
  $region10: #{ortho_loss.1} parent=0 // pred_check
    %p46 = pneg %p45
  $region11: #{ortho_loss.1} parent=0 // pred_check_branch
    %48 = sbr.rel (%p46) target = $region13
  $region12: #{ortho_loss.1} parent=0 // pred_region
    %49 = vst [vmem:[%s2] sm:$0xff] 0.0
    %50 = vst [vmem:[%s2 + $0x8] sm:$0xff] 0.0
  $region13: #{ortho_loss.1} parent=0 // pred_fallthru
    _
  %v51 = vld [vmem:[%s37] sm:$0xff]
  %v52 = vld [vmem:[%s37 + $0x8] sm:$0xff]
  %v53 = vld [vmem:[%s43] sm:$0xff]
  %v54 = vld [vmem:[%s43 + $0x8] sm:$0xff]
  %v55 = vmul.f32 %v51, %v53
  %v56 = vmul.f32 %v52, %v54
  %v57 = vld [vmem:[%s2] sm:$0xff]
  %v58 = vld [vmem:[%s2 + $0x8] sm:$0xff]
  %v59 = vadd.f32 %v55, 0.0
  %v60 = vadd.f32 %v56, 0.0
  %v61 = vadd.f32 %v57, %v59
  %v62 = vadd.f32 %v58, %v60
  %63 = vst [vmem:[%s2] sm:$0xff] %v61
  %64 = vst [vmem:[%s2 + $0x8] sm:$0xff] %v62
  // Predicated region
  $region14: #{ortho_loss.1} parent=0 // pred_check
    _
  $region15: #{ortho_loss.1} parent=0 // pred_check_branch
    %66 = sbr.rel (0) target = $region17
  $region16: #{ortho_loss.1} parent=0 // pred_region
    _
  $region17: #{ortho_loss.1} parent=0 // pred_fallthru
    _
  // Predicated region
  $region18: #{ortho_loss.1} parent=0 // pred_check
    _
  $region19: #{ortho_loss.1} parent=0 // pred_check_branch
    %68 = sbr.rel (0) target = $region21
  $region20: #{ortho_loss.1} parent=0 // pred_region
    _
  $region21: #{ortho_loss.1} parent=0 // pred_fallthru
    _

</llo_original>
